<compile_context>
chip_gen: v5e
topology: v5e:2x2
jax: 0.10.0
libtpu: 0.0.40
codegen_flags: <defaults>
</compile_context>

<pallas_src>
import jax
import jax.numpy as jnp
from jax.experimental import pallas as pl
from jax.experimental.pallas import tpu as pltpu

# Model dims (fixed by the PyTorch module spec).
IN_F, H1, H2, OUT_F = 4, 8, 9, 3

# Packed-parameter slab layout: each layer's [W | b] block starts on a sublane-tile row.
R1 = 0
R2 = R1 + ((H1 + 7) // 8) * 8          # 8
R3 = R2 + ((H2 + 7) // 8) * 8          # 24
SLAB_ROWS = R3 + ((OUT_F + 7) // 8) * 8  # 32
SLAB_COLS = 128


def mlp_kernel(p_ref, x_ref, o_ref):
    # p_ref: (SLAB_ROWS, SLAB_COLS) packed params, x_ref: (IN_F, TB), o_ref: (OUT_F, TB)
    p = p_ref[...]
    x = x_ref[...]
    tb = x.shape[1]

    def dense(xin, row0, n_in, n_out, relu):
        # [W | b] block: W is (n_out, n_in), bias is column n_in.
        wb = p[row0:row0 + n_out, :n_in + 1]
        acc = jnp.broadcast_to(wb[:, n_in:n_in + 1], (n_out, tb))  # bias
        # Tiny K (4/8/9): unrolled VPU outer-product accumulate, exact f32.
        for k in range(n_in):
            acc = acc + wb[:, k:k + 1] * xin[k:k + 1, :]
        return jnp.maximum(acc, 0.0) if relu else acc

    h1 = dense(x, R1, IN_F, H1, True)
    h2 = dense(h1, R2, H1, H2, True)
    o_ref[...] = dense(h2, R3, H2, OUT_F, False)


def pack_params(params):
    """Pack PyTorch-layout params (w:(out,in), b:(out,)) into one (32,128) f32 slab."""
    w1, b1, w2, b2, w3, b3 = params
    slab = jnp.zeros((SLAB_ROWS, SLAB_COLS), jnp.float32)
    slab = slab.at[R1:R1 + H1, :IN_F].set(w1).at[R1:R1 + H1, IN_F].set(b1)
    slab = slab.at[R2:R2 + H2, :H1].set(w2).at[R2:R2 + H2, H1].set(b2)
    slab = slab.at[R3:R3 + OUT_F, :H2].set(w3).at[R3:R3 + OUT_F, H2].set(b3)
    return slab


def mlp_forward(x, slab):
    B, in_f = x.shape
    assert in_f == IN_F

    # Lane-dense batch tile: multiple of 128, capped so VMEM stays tiny on all chips.
    Bp = pl.cdiv(B, 128) * 128
    TB = min(1024, Bp)
    Bp = pl.cdiv(Bp, TB) * TB
    grid = (Bp // TB,)

    # Transpose so batch is on the lane axis; zero-pad batch to Bp.
    xt = jnp.zeros((IN_F, Bp), jnp.float32).at[:, :B].set(x.T)

    out_t = pl.pallas_call(
        mlp_kernel,
        out_shape=jax.ShapeDtypeStruct((OUT_F, Bp), jnp.float32),
        grid=grid,
        in_specs=[
            # Parameter slab: constant block index -> fetched once, stays resident.
            pl.BlockSpec((SLAB_ROWS, SLAB_COLS), lambda i: (0, 0)),
            pl.BlockSpec((IN_F, TB), lambda i: (0, i)),
        ],
        out_specs=pl.BlockSpec((OUT_F, TB), lambda i: (0, i)),
        compiler_params=pltpu.CompilerParams(
            dimension_semantics=("parallel",),  # shard batch grid across TCs (v7x)
        ),
    )(slab, xt)

    return out_t[:, :B].T  # back to (B, OUT_F)


def init_params(key):
    """PyTorch nn.Linear default init: U(-1/sqrt(fan_in), 1/sqrt(fan_in)), w:(out,in)."""
    dims = [(IN_F, H1), (H1, H2), (H2, OUT_F)]
    params = []
    for fan_in, fan_out in dims:
        key, kw, kb = jax.random.split(key, 3)
        bound = 1.0 / (fan_in ** 0.5)
        w = jax.random.uniform(kw, (fan_out, fan_in), jnp.float32, -bound, bound)
        b = jax.random.uniform(kb, (fan_out,), jnp.float32, -bound, bound)
        params += [w, b]
    return tuple(params)


def reference_forward(x, params):
    w1, b1, w2, b2, w3, b3 = params
    hi = jax.lax.Precision.HIGHEST
    h = jnp.maximum(jnp.dot(x, w1.T, precision=hi) + b1, 0.0)
    h = jnp.maximum(jnp.dot(h, w2.T, precision=hi) + b2, 0.0)
    return jnp.dot(h, w3.T, precision=hi) + b3


if __name__ == "__main__":
    key = jax.random.PRNGKey(0)
    key, kx = jax.random.split(key)
    B = 8
    x = jax.random.normal(kx, (B, IN_F), jnp.float32)

    params = init_params(key)
    slab = pack_params(params)

    out = jax.block_until_ready(mlp_forward(x, slab))
    ref = reference_forward(x, params)

    assert out.shape == (B, OUT_F)
    assert jnp.allclose(out, ref, atol=1e-5, rtol=1e-5), float(jnp.max(jnp.abs(out - ref)))
    print("KERNEL_OK")
</pallas_src>

<mosaic_0001>
module attributes {stable_mosaic.version = 11 : i64} {
  func.func @mlp_kernel(%arg0: i32, %arg1: memref<32x128xf32, #tpu.memory_space<vmem>>, %arg2: memref<4x128xf32, #tpu.memory_space<vmem>>, %arg3: memref<3x128xf32, #tpu.memory_space<vmem>>) attributes {dimension_semantics = [#tpu.dimension_semantics<parallel>], iteration_bounds = array<i64: 1>, scalar_prefetch = 0 : i64, scratch_operands = 0 : i64, tpu.core_type = #tpu.core_type<tc>, window_params = [{pipeline_mode = #tpu.pipeline_mode<synchronous>, transform_indices = @transform_0, window_bounds = array<i64: 32, 128>}, {transform_indices = @transform_1, window_bounds = array<i64: 4, 128>}, {transform_indices = @transform_2, window_bounds = array<i64: 3, 128>}]} {
    %c0 = arith.constant 0 : index
    %c0_0 = arith.constant 0 : index
    %0 = vector.load %arg1[%c0, %c0_0] : memref<32x128xf32, #tpu.memory_space<vmem>>, vector<32x128xf32>
    %c0_1 = arith.constant 0 : index
    %c0_2 = arith.constant 0 : index
    %1 = vector.load %arg2[%c0_1, %c0_2] : memref<4x128xf32, #tpu.memory_space<vmem>>, vector<4x128xf32>
    %2 = vector.extract_strided_slice %0 {offsets = [0, 0], sizes = [8, 5], strides = [1, 1]} : vector<32x128xf32> to vector<8x5xf32>
    %3 = vector.extract_strided_slice %2 {offsets = [0, 4], sizes = [8, 1], strides = [1, 1]} : vector<8x5xf32> to vector<8x1xf32>
    %4 = vector.shape_cast %3 : vector<8x1xf32> to vector<8x1xf32>
    %5 = vector.broadcast %4 : vector<8x1xf32> to vector<8x128xf32>
    %6 = vector.extract_strided_slice %2 {offsets = [0, 0], sizes = [8, 1], strides = [1, 1]} : vector<8x5xf32> to vector<8x1xf32>
    %7 = vector.extract_strided_slice %1 {offsets = [0, 0], sizes = [1, 128], strides = [1, 1]} : vector<4x128xf32> to vector<1x128xf32>
    %8 = vector.broadcast %6 : vector<8x1xf32> to vector<8x128xf32>
    %9 = vector.broadcast %7 : vector<1x128xf32> to vector<8x128xf32>
    %10 = arith.mulf %8, %9 : vector<8x128xf32>
    %11 = arith.addf %5, %10 : vector<8x128xf32>
    %12 = vector.extract_strided_slice %2 {offsets = [0, 1], sizes = [8, 1], strides = [1, 1]} : vector<8x5xf32> to vector<8x1xf32>
    %13 = vector.extract_strided_slice %1 {offsets = [1, 0], sizes = [1, 128], strides = [1, 1]} : vector<4x128xf32> to vector<1x128xf32>
    %14 = vector.broadcast %12 : vector<8x1xf32> to vector<8x128xf32>
    %15 = vector.broadcast %13 : vector<1x128xf32> to vector<8x128xf32>
    %16 = arith.mulf %14, %15 : vector<8x128xf32>
    %17 = arith.addf %11, %16 : vector<8x128xf32>
    %18 = vector.extract_strided_slice %2 {offsets = [0, 2], sizes = [8, 1], strides = [1, 1]} : vector<8x5xf32> to vector<8x1xf32>
    %19 = vector.extract_strided_slice %1 {offsets = [2, 0], sizes = [1, 128], strides = [1, 1]} : vector<4x128xf32> to vector<1x128xf32>
    %20 = vector.broadcast %18 : vector<8x1xf32> to vector<8x128xf32>
    %21 = vector.broadcast %19 : vector<1x128xf32> to vector<8x128xf32>
    %22 = arith.mulf %20, %21 : vector<8x128xf32>
    %23 = arith.addf %17, %22 : vector<8x128xf32>
    %24 = vector.extract_strided_slice %2 {offsets = [0, 3], sizes = [8, 1], strides = [1, 1]} : vector<8x5xf32> to vector<8x1xf32>
    %25 = vector.extract_strided_slice %1 {offsets = [3, 0], sizes = [1, 128], strides = [1, 1]} : vector<4x128xf32> to vector<1x128xf32>
    %26 = vector.broadcast %24 : vector<8x1xf32> to vector<8x128xf32>
    %27 = vector.broadcast %25 : vector<1x128xf32> to vector<8x128xf32>
    %28 = arith.mulf %26, %27 : vector<8x128xf32>
    %29 = arith.addf %23, %28 : vector<8x128xf32>
    %cst = arith.constant 0.000000e+00 : f32
    %30 = vector.broadcast %cst : f32 to vector<8x128xf32>
    %31 = arith.maximumf %29, %30 : vector<8x128xf32>
    %32 = vector.extract_strided_slice %0 {offsets = [8, 0], sizes = [9, 9], strides = [1, 1]} : vector<32x128xf32> to vector<9x9xf32>
    %33 = vector.extract_strided_slice %32 {offsets = [0, 8], sizes = [9, 1], strides = [1, 1]} : vector<9x9xf32> to vector<9x1xf32>
    %34 = vector.shape_cast %33 : vector<9x1xf32> to vector<9x1xf32>
    %35 = vector.broadcast %34 : vector<9x1xf32> to vector<9x128xf32>
    %36 = vector.extract_strided_slice %32 {offsets = [0, 0], sizes = [9, 1], strides = [1, 1]} : vector<9x9xf32> to vector<9x1xf32>
    %37 = vector.extract_strided_slice %31 {offsets = [0, 0], sizes = [1, 128], strides = [1, 1]} : vector<8x128xf32> to vector<1x128xf32>
    %38 = vector.broadcast %36 : vector<9x1xf32> to vector<9x128xf32>
    %39 = vector.broadcast %37 : vector<1x128xf32> to vector<9x128xf32>
    %40 = arith.mulf %38, %39 : vector<9x128xf32>
    %41 = arith.addf %35, %40 : vector<9x128xf32>
    %42 = vector.extract_strided_slice %32 {offsets = [0, 1], sizes = [9, 1], strides = [1, 1]} : vector<9x9xf32> to vector<9x1xf32>
    %43 = vector.extract_strided_slice %31 {offsets = [1, 0], sizes = [1, 128], strides = [1, 1]} : vector<8x128xf32> to vector<1x128xf32>
    %44 = vector.broadcast %42 : vector<9x1xf32> to vector<9x128xf32>
    %45 = vector.broadcast %43 : vector<1x128xf32> to vector<9x128xf32>
    %46 = arith.mulf %44, %45 : vector<9x128xf32>
    %47 = arith.addf %41, %46 : vector<9x128xf32>
    %48 = vector.extract_strided_slice %32 {offsets = [0, 2], sizes = [9, 1], strides = [1, 1]} : vector<9x9xf32> to vector<9x1xf32>
    %49 = vector.extract_strided_slice %31 {offsets = [2, 0], sizes = [1, 128], strides = [1, 1]} : vector<8x128xf32> to vector<1x128xf32>
    %50 = vector.broadcast %48 : vector<9x1xf32> to vector<9x128xf32>
    %51 = vector.broadcast %49 : vector<1x128xf32> to vector<9x128xf32>
    %52 = arith.mulf %50, %51 : vector<9x128xf32>
    %53 = arith.addf %47, %52 : vector<9x128xf32>
    %54 = vector.extract_strided_slice %32 {offsets = [0, 3], sizes = [9, 1], strides = [1, 1]} : vector<9x9xf32> to vector<9x1xf32>
    %55 = vector.extract_strided_slice %31 {offsets = [3, 0], sizes = [1, 128], strides = [1, 1]} : vector<8x128xf32> to vector<1x128xf32>
    %56 = vector.broadcast %54 : vector<9x1xf32> to vector<9x128xf32>
    %57 = vector.broadcast %55 : vector<1x128xf32> to vector<9x128xf32>
    %58 = arith.mulf %56, %57 : vector<9x128xf32>
    %59 = arith.addf %53, %58 : vector<9x128xf32>
    %60 = vector.extract_strided_slice %32 {offsets = [0, 4], sizes = [9, 1], strides = [1, 1]} : vector<9x9xf32> to vector<9x1xf32>
    %61 = vector.extract_strided_slice %31 {offsets = [4, 0], sizes = [1, 128], strides = [1, 1]} : vector<8x128xf32> to vector<1x128xf32>
    %62 = vector.broadcast %60 : vector<9x1xf32> to vector<9x128xf32>
    %63 = vector.broadcast %61 : vector<1x128xf32> to vector<9x128xf32>
    %64 = arith.mulf %62, %63 : vector<9x128xf32>
    %65 = arith.addf %59, %64 : vector<9x128xf32>
    %66 = vector.extract_strided_slice %32 {offsets = [0, 5], sizes = [9, 1], strides = [1, 1]} : vector<9x9xf32> to vector<9x1xf32>
    %67 = vector.extract_strided_slice %31 {offsets = [5, 0], sizes = [1, 128], strides = [1, 1]} : vector<8x128xf32> to vector<1x128xf32>
    %68 = vector.broadcast %66 : vector<9x1xf32> to vector<9x128xf32>
    %69 = vector.broadcast %67 : vector<1x128xf32> to vector<9x128xf32>
    %70 = arith.mulf %68, %69 : vector<9x128xf32>
    %71 = arith.addf %65, %70 : vector<9x128xf32>
    %72 = vector.extract_strided_slice %32 {offsets = [0, 6], sizes = [9, 1], strides = [1, 1]} : vector<9x9xf32> to vector<9x1xf32>
    %73 = vector.extract_strided_slice %31 {offsets = [6, 0], sizes = [1, 128], strides = [1, 1]} : vector<8x128xf32> to vector<1x128xf32>
    %74 = vector.broadcast %72 : vector<9x1xf32> to vector<9x128xf32>
    %75 = vector.broadcast %73 : vector<1x128xf32> to vector<9x128xf32>
    %76 = arith.mulf %74, %75 : vector<9x128xf32>
    %77 = arith.addf %71, %76 : vector<9x128xf32>
    %78 = vector.extract_strided_slice %32 {offsets = [0, 7], sizes = [9, 1], strides = [1, 1]} : vector<9x9xf32> to vector<9x1xf32>
    %79 = vector.extract_strided_slice %31 {offsets = [7, 0], sizes = [1, 128], strides = [1, 1]} : vector<8x128xf32> to vector<1x128xf32>
    %80 = vector.broadcast %78 : vector<9x1xf32> to vector<9x128xf32>
    %81 = vector.broadcast %79 : vector<1x128xf32> to vector<9x128xf32>
    %82 = arith.mulf %80, %81 : vector<9x128xf32>
    %83 = arith.addf %77, %82 : vector<9x128xf32>
    %cst_3 = arith.constant 0.000000e+00 : f32
    %84 = vector.broadcast %cst_3 : f32 to vector<9x128xf32>
    %85 = arith.maximumf %83, %84 : vector<9x128xf32>
    %86 = vector.extract_strided_slice %0 {offsets = [24, 0], sizes = [3, 10], strides = [1, 1]} : vector<32x128xf32> to vector<3x10xf32>
    %87 = vector.extract_strided_slice %86 {offsets = [0, 9], sizes = [3, 1], strides = [1, 1]} : vector<3x10xf32> to vector<3x1xf32>
    %88 = vector.shape_cast %87 : vector<3x1xf32> to vector<3x1xf32>
    %89 = vector.broadcast %88 : vector<3x1xf32> to vector<3x128xf32>
    %90 = vector.extract_strided_slice %86 {offsets = [0, 0], sizes = [3, 1], strides = [1, 1]} : vector<3x10xf32> to vector<3x1xf32>
    %91 = vector.extract_strided_slice %85 {offsets = [0, 0], sizes = [1, 128], strides = [1, 1]} : vector<9x128xf32> to vector<1x128xf32>
    %92 = vector.broadcast %90 : vector<3x1xf32> to vector<3x128xf32>
    %93 = vector.broadcast %91 : vector<1x128xf32> to vector<3x128xf32>
    %94 = arith.mulf %92, %93 : vector<3x128xf32>
    %95 = arith.addf %89, %94 : vector<3x128xf32>
    %96 = vector.extract_strided_slice %86 {offsets = [0, 1], sizes = [3, 1], strides = [1, 1]} : vector<3x10xf32> to vector<3x1xf32>
    %97 = vector.extract_strided_slice %85 {offsets = [1, 0], sizes = [1, 128], strides = [1, 1]} : vector<9x128xf32> to vector<1x128xf32>
    %98 = vector.broadcast %96 : vector<3x1xf32> to vector<3x128xf32>
    %99 = vector.broadcast %97 : vector<1x128xf32> to vector<3x128xf32>
    %100 = arith.mulf %98, %99 : vector<3x128xf32>
    %101 = arith.addf %95, %100 : vector<3x128xf32>
    %102 = vector.extract_strided_slice %86 {offsets = [0, 2], sizes = [3, 1], strides = [1, 1]} : vector<3x10xf32> to vector<3x1xf32>
    %103 = vector.extract_strided_slice %85 {offsets = [2, 0], sizes = [1, 128], strides = [1, 1]} : vector<9x128xf32> to vector<1x128xf32>
    %104 = vector.broadcast %102 : vector<3x1xf32> to vector<3x128xf32>
    %105 = vector.broadcast %103 : vector<1x128xf32> to vector<3x128xf32>
    %106 = arith.mulf %104, %105 : vector<3x128xf32>
    %107 = arith.addf %101, %106 : vector<3x128xf32>
    %108 = vector.extract_strided_slice %86 {offsets = [0, 3], sizes = [3, 1], strides = [1, 1]} : vector<3x10xf32> to vector<3x1xf32>
    %109 = vector.extract_strided_slice %85 {offsets = [3, 0], sizes = [1, 128], strides = [1, 1]} : vector<9x128xf32> to vector<1x128xf32>
    %110 = vector.broadcast %108 : vector<3x1xf32> to vector<3x128xf32>
    %111 = vector.broadcast %109 : vector<1x128xf32> to vector<3x128xf32>
    %112 = arith.mulf %110, %111 : vector<3x128xf32>
    %113 = arith.addf %107, %112 : vector<3x128xf32>
    %114 = vector.extract_strided_slice %86 {offsets = [0, 4], sizes = [3, 1], strides = [1, 1]} : vector<3x10xf32> to vector<3x1xf32>
    %115 = vector.extract_strided_slice %85 {offsets = [4, 0], sizes = [1, 128], strides = [1, 1]} : vector<9x128xf32> to vector<1x128xf32>
    %116 = vector.broadcast %114 : vector<3x1xf32> to vector<3x128xf32>
    %117 = vector.broadcast %115 : vector<1x128xf32> to vector<3x128xf32>
    %118 = arith.mulf %116, %117 : vector<3x128xf32>
    %119 = arith.addf %113, %118 : vector<3x128xf32>
    %120 = vector.extract_strided_slice %86 {offsets = [0, 5], sizes = [3, 1], strides = [1, 1]} : vector<3x10xf32> to vector<3x1xf32>
    %121 = vector.extract_strided_slice %85 {offsets = [5, 0], sizes = [1, 128], strides = [1, 1]} : vector<9x128xf32> to vector<1x128xf32>
    %122 = vector.broadcast %120 : vector<3x1xf32> to vector<3x128xf32>
    %123 = vector.broadcast %121 : vector<1x128xf32> to vector<3x128xf32>
    %124 = arith.mulf %122, %123 : vector<3x128xf32>
    %125 = arith.addf %119, %124 : vector<3x128xf32>
    %126 = vector.extract_strided_slice %86 {offsets = [0, 6], sizes = [3, 1], strides = [1, 1]} : vector<3x10xf32> to vector<3x1xf32>
    %127 = vector.extract_strided_slice %85 {offsets = [6, 0], sizes = [1, 128], strides = [1, 1]} : vector<9x128xf32> to vector<1x128xf32>
    %128 = vector.broadcast %126 : vector<3x1xf32> to vector<3x128xf32>
    %129 = vector.broadcast %127 : vector<1x128xf32> to vector<3x128xf32>
    %130 = arith.mulf %128, %129 : vector<3x128xf32>
    %131 = arith.addf %125, %130 : vector<3x128xf32>
    %132 = vector.extract_strided_slice %86 {offsets = [0, 7], sizes = [3, 1], strides = [1, 1]} : vector<3x10xf32> to vector<3x1xf32>
    %133 = vector.extract_strided_slice %85 {offsets = [7, 0], sizes = [1, 128], strides = [1, 1]} : vector<9x128xf32> to vector<1x128xf32>
    %134 = vector.broadcast %132 : vector<3x1xf32> to vector<3x128xf32>
    %135 = vector.broadcast %133 : vector<1x128xf32> to vector<3x128xf32>
    %136 = arith.mulf %134, %135 : vector<3x128xf32>
    %137 = arith.addf %131, %136 : vector<3x128xf32>
    %138 = vector.extract_strided_slice %86 {offsets = [0, 8], sizes = [3, 1], strides = [1, 1]} : vector<3x10xf32> to vector<3x1xf32>
    %139 = vector.extract_strided_slice %85 {offsets = [8, 0], sizes = [1, 128], strides = [1, 1]} : vector<9x128xf32> to vector<1x128xf32>
    %140 = vector.broadcast %138 : vector<3x1xf32> to vector<3x128xf32>
    %141 = vector.broadcast %139 : vector<1x128xf32> to vector<3x128xf32>
    %142 = arith.mulf %140, %141 : vector<3x128xf32>
    %143 = arith.addf %137, %142 : vector<3x128xf32>
    %c0_4 = arith.constant 0 : index
    %c0_5 = arith.constant 0 : index
    %144 = vector.load %arg3[%c0_4, %c0_5] : memref<3x128xf32, #tpu.memory_space<vmem>>, vector<3x128xf32>
    tpu.vector_store %arg3[%c0_4, %c0_5], %143 {strides = array<i32>} : memref<3x128xf32, #tpu.memory_space<vmem>>, vector<3x128xf32>,
    return
  }
  func.func @transform_0(%arg0: i32) -> (i32, i32) {
    %c0_i32 = arith.constant 0 : i32
    %c0_i32_0 = arith.constant 0 : i32
    %c0_i32_1 = arith.constant 0 : i32
    return %c0_i32, %c0_i32_0 : i32, i32
  }
  func.func @transform_1(%arg0: i32) -> (i32, i32) {
    %c0_i32 = arith.constant 0 : i32
    %c0_i32_0 = arith.constant 0 : i32
    return %c0_i32, %arg0 : i32, i32
  }
  func.func @transform_2(%arg0: i32) -> (i32, i32) {
    %c0_i32 = arith.constant 0 : i32
    %c0_i32_0 = arith.constant 0 : i32
    return %c0_i32, %arg0 : i32, i32
  }
}

</mosaic_0001>

<llo_original>
// kernel: tpu_custom_call.1
$region0: #{tpu_custom_call.1}
  #allocation0 [shape = 'u32[]', space=smem, size = 0x4, offset = 0x4, fixed_abs, tag = 'smem constant byte address 0x4 - core index']
  #allocation1 [shape = 'u32[72,128]{1,0:T(1,128)}', space=vmem, size = 0x9000, scoped, tag = 'internal scratch']
  %s0 = inlined_call_operand.hbm [shape: f32[32,128], index: 0, kind: input, shape index: {}]
  %s1 = inlined_call_operand.hbm [shape: f32[4,128], index: 1, kind: input, shape index: {}]
  %s2 = inlined_call_operand.hbm [shape: f32[3,128], index: 2, kind: output, shape index: {}]
  %s3 = sld [smem:[#allocation0]]
  $region26: #{tpu_custom_call.1} parent=0
    _
  %s5 = ssub.s32 1, %s3
  %s6 = scalar_select 0, %s5, %s3
  $region1: #{tpu_custom_call.1} parent=0
    #allocation2 [shape = 'u8[16384]{0}', space=vmem, size = 0x4000, scoped, tag = 'input window, operand 0, single buffered']
    #allocation3 [shape = 's32[1]{0}', space=sflag, size = 0x4, scoped, tag = 'scoped memory for tpu_custom_call.1']
    #allocation4 [shape = 's32[1]{0}', space=sflag, size = 0x4, scoped, tag = 'scoped memory for tpu_custom_call.1']
    #allocation5 [shape = 'u8[2048]{0}', space=vmem, size = 0x800, scoped, tag = 'input window, operand 1, single buffered']
    #allocation6 [shape = 's32[1]{0}', space=sflag, size = 0x4, scoped, tag = 'scoped memory for tpu_custom_call.1']
    #allocation7 [shape = 'u8[2048]{0}', space=vmem, size = 0x800, scoped, tag = 'output window, operand 0, single buffered']
    %7 = vsyncpa [#allocation3], 0
    %8 = vsyncpa [#allocation6], 0
    %9 = vsyncpa [#allocation4], 0
    // Predicated region
    $region2: #{tpu_custom_call.1} parent=1 // pred_check
      _
    $region3: #{tpu_custom_call.1} parent=1 // pred_check_branch
      %11 = sbr.rel (0) target = $region5
    $region4: #{tpu_custom_call.1} parent=1 // pred_region
      %13 = vsyncadd [#allocation3], 0
      %s14 = sshll.u32 %s0, 4
      %s15 = int_to_ptr.hbm [resolvable:$true] %s14
      %s16 = sshll.u32 [#allocation2], 4
      %s17 = int_to_ptr.vmem [resolvable:$true] %s16
      %22 = dma.hbm_to_vmem [thread:$0]  %s15, 512, %s17, [#allocation3], 128, 128, 8
    $region5: #{tpu_custom_call.1} parent=1 // pred_fallthru
      _
    // Predicated region
    $region6: #{tpu_custom_call.1} parent=1 // pred_check
      _
    $region7: #{tpu_custom_call.1} parent=1 // pred_check_branch
      %24 = sbr.rel (0) target = $region9
    $region8: #{tpu_custom_call.1} parent=1 // pred_region
      %26 = vsyncadd [#allocation6], 0
      %s28 = sshll.u32 %s1, 4
      %s29 = int_to_ptr.hbm [resolvable:$true] %s28
      %s30 = sshll.u32 [#allocation5], 4
      %s31 = int_to_ptr.vmem [resolvable:$true] %s30
      %33 = dma.hbm_to_vmem [thread:$0]  %s29, 64, %s31, [#allocation6]
    $region9: #{tpu_custom_call.1} parent=1 // pred_fallthru
      _
    // Predicated region
    $region10: #{tpu_custom_call.1} parent=1 // pred_check
      _
    $region11: #{tpu_custom_call.1} parent=1 // pred_check_branch
      %35 = sbr.rel (0) target = $region13
    $region12: #{tpu_custom_call.1} parent=1 // pred_region
      %37 = dma.done [#allocation3], 512
    $region13: #{tpu_custom_call.1} parent=1 // pred_fallthru
      _
    // Predicated region
    $region14: #{tpu_custom_call.1} parent=1 // pred_check
      _
    $region15: #{tpu_custom_call.1} parent=1 // pred_check_branch
      %39 = sbr.rel (0) target = $region17
    $region16: #{tpu_custom_call.1} parent=1 // pred_region
      %41 = dma.done [#allocation6], 64
    $region17: #{tpu_custom_call.1} parent=1 // pred_fallthru
      _
    %v42 = vld [vmem:[#allocation2] sm:$0xff]
    %v43 = vld [vmem:[#allocation2 + $0x8] sm:$0xff]
    %v44 = vld [vmem:[#allocation2 + $0x10] sm:$0xff]
    %v45 = vld [vmem:[#allocation2 + $0x18] sm:$0xff]
    %v46 = vld [vmem:[#allocation5] sm:$0xf]
    %48 = vset.pattern.permute.xlu0 4
    %49 = vperm.xlu0 %48, %v42
    %v50 = vpop.permute.xlu0 %49
    %52 = vset.pattern.permute.xlu0 0
    %53 = vperm.xlu0 %52, %v42
    %v54 = vpop.permute.xlu0 %53
    %v56 = vperm.slane %v46, 0
    %v57 = vmul.f32 %v54, %v56
    %v58 = vadd.f32 %v50, %v57
    %59 = vset.pattern.permute.xlu0 1
    %60 = vperm.xlu0 %59, %v42
    %v61 = vpop.permute.xlu0 %60
    %v63 = vperm.slane %v46, 1
    %v64 = vmul.f32 %v61, %v63
    %v65 = vadd.f32 %v58, %v64
    %66 = vset.pattern.permute.xlu0 2
    %67 = vperm.xlu0 %66, %v42
    %v68 = vpop.permute.xlu0 %67
    %v70 = vperm.slane %v46, 2
    %v71 = vmul.f32 %v68, %v70
    %v72 = vadd.f32 %v65, %v71
    %73 = vset.pattern.permute.xlu0 3
    %74 = vperm.xlu0 %73, %v42
    %v75 = vpop.permute.xlu0 %74
    %v77 = vperm.slane %v46, 3
    %v78 = vmul.f32 %v75, %v77
    %v79 = vadd.f32 %v72, %v78
    %v80 = vmax.f32 %v79, 0.0
    %82 = vset.pattern.permute.xlu0 8
    %83 = vperm.xlu0 %82, %v43
    %v84 = vpop.permute.xlu0 %83
    %87 = vset.pattern.permute.xlu0 8
    %88 = vperm.xlu0 %87, %v44
    %v89 = vpop.permute.xlu0 %88
    %91 = vset.pattern.permute.xlu0 0
    %92 = vperm.xlu0 %91, %v43
    %v93 = vpop.permute.xlu0 %92
    %95 = vset.pattern.permute.xlu0 0
    %96 = vperm.xlu0 %95, %v44
    %v97 = vpop.permute.xlu0 %96
    %v99 = vperm.slane %v80, 0
    %v100 = vmul.f32 %v93, %v99
    %v101 = vmul.f32 %v97, %v99
    %v102 = vadd.f32 %v84, %v100
    %v103 = vadd.f32 %v89, %v101
    %104 = vset.pattern.permute.xlu0 1
    %105 = vperm.xlu0 %104, %v43
    %v106 = vpop.permute.xlu0 %105
    %108 = vset.pattern.permute.xlu0 1
    %109 = vperm.xlu0 %108, %v44
    %v110 = vpop.permute.xlu0 %109
    %v112 = vperm.slane %v80, 1
    %v113 = vmul.f32 %v106, %v112
    %v114 = vmul.f32 %v110, %v112
    %v115 = vadd.f32 %v102, %v113
    %v116 = vadd.f32 %v103, %v114
    %117 = vset.pattern.permute.xlu0 2
    %118 = vperm.xlu0 %117, %v43
    %v119 = vpop.permute.xlu0 %118
    %121 = vset.pattern.permute.xlu0 2
    %122 = vperm.xlu0 %121, %v44
    %v123 = vpop.permute.xlu0 %122
    %v125 = vperm.slane %v80, 2
    %v126 = vmul.f32 %v119, %v125
    %v127 = vmul.f32 %v123, %v125
    %v128 = vadd.f32 %v115, %v126
    %v129 = vadd.f32 %v116, %v127
    %130 = vset.pattern.permute.xlu0 3
    %131 = vperm.xlu0 %130, %v43
    %v132 = vpop.permute.xlu0 %131
    %134 = vset.pattern.permute.xlu0 3
    %135 = vperm.xlu0 %134, %v44
    %v136 = vpop.permute.xlu0 %135
    %v138 = vperm.slane %v80, 3
    %v139 = vmul.f32 %v132, %v138
    %v140 = vmul.f32 %v136, %v138
    %v141 = vadd.f32 %v128, %v139
    %v142 = vadd.f32 %v129, %v140
    %143 = vset.pattern.permute.xlu0 4
    %144 = vperm.xlu0 %143, %v43
    %v145 = vpop.permute.xlu0 %144
    %147 = vset.pattern.permute.xlu0 4
    %148 = vperm.xlu0 %147, %v44
    %v149 = vpop.permute.xlu0 %148
    %v151 = vperm.slane %v80, 4
    %v152 = vmul.f32 %v145, %v151
    %v153 = vmul.f32 %v149, %v151
    %v154 = vadd.f32 %v141, %v152
    %v155 = vadd.f32 %v142, %v153
    %156 = vset.pattern.permute.xlu0 5
    %157 = vperm.xlu0 %156, %v43
    %v158 = vpop.permute.xlu0 %157
    %160 = vset.pattern.permute.xlu0 5
    %161 = vperm.xlu0 %160, %v44
    %v162 = vpop.permute.xlu0 %161
    %v164 = vperm.slane %v80, 5
    %v165 = vmul.f32 %v158, %v164
    %v166 = vmul.f32 %v162, %v164
    %v167 = vadd.f32 %v154, %v165
    %v168 = vadd.f32 %v155, %v166
    %169 = vset.pattern.permute.xlu0 6
    %170 = vperm.xlu0 %169, %v43
    %v171 = vpop.permute.xlu0 %170
    %173 = vset.pattern.permute.xlu0 6
    %174 = vperm.xlu0 %173, %v44
    %v175 = vpop.permute.xlu0 %174
    %v177 = vperm.slane %v80, 6
    %v178 = vmul.f32 %v171, %v177
    %v179 = vmul.f32 %v175, %v177
    %v180 = vadd.f32 %v167, %v178
    %v181 = vadd.f32 %v168, %v179
    %182 = vset.pattern.permute.xlu0 7
    %183 = vperm.xlu0 %182, %v43
    %v184 = vpop.permute.xlu0 %183
    %186 = vset.pattern.permute.xlu0 7
    %187 = vperm.xlu0 %186, %v44
    %v188 = vpop.permute.xlu0 %187
    %v190 = vperm.slane %v80, 7
    %v191 = vmul.f32 %v184, %v190
    %v192 = vmul.f32 %v188, %v190
    %v193 = vadd.f32 %v180, %v191
    %v194 = vadd.f32 %v181, %v192
    %v195 = vmax.f32 %v193, 0.0
    %v196 = vmax.f32 %v194, 0.0
    %198 = vset.pattern.permute.xlu0 9
    %199 = vperm.xlu0 %198, %v45
    %v200 = vpop.permute.xlu0 %199
    %202 = vset.pattern.permute.xlu0 0
    %203 = vperm.xlu0 %202, %v45
    %v204 = vpop.permute.xlu0 %203
    %v206 = vperm.slane %v195, 0
    %v207 = vmul.f32 %v204, %v206
    %v208 = vadd.f32 %v200, %v207
    %209 = vset.pattern.permute.xlu0 1
    %210 = vperm.xlu0 %209, %v45
    %v211 = vpop.permute.xlu0 %210
    %v213 = vperm.slane %v195, 1
    %v214 = vmul.f32 %v211, %v213
    %v215 = vadd.f32 %v208, %v214
    %216 = vset.pattern.permute.xlu0 2
    %217 = vperm.xlu0 %216, %v45
    %v218 = vpop.permute.xlu0 %217
    %v220 = vperm.slane %v195, 2
    %v221 = vmul.f32 %v218, %v220
    %v222 = vadd.f32 %v215, %v221
    %223 = vset.pattern.permute.xlu0 3
    %224 = vperm.xlu0 %223, %v45
    %v225 = vpop.permute.xlu0 %224
    %v227 = vperm.slane %v195, 3
    %v228 = vmul.f32 %v225, %v227
    %v229 = vadd.f32 %v222, %v228
    %230 = vset.pattern.permute.xlu0 4
    %231 = vperm.xlu0 %230, %v45
    %v232 = vpop.permute.xlu0 %231
    %v234 = vperm.slane %v195, 4
    %v235 = vmul.f32 %v232, %v234
    %v236 = vadd.f32 %v229, %v235
    %237 = vset.pattern.permute.xlu0 5
    %238 = vperm.xlu0 %237, %v45
    %v239 = vpop.permute.xlu0 %238
    %v241 = vperm.slane %v195, 5
    %v242 = vmul.f32 %v239, %v241
    %v243 = vadd.f32 %v236, %v242
    %244 = vset.pattern.permute.xlu0 6
    %245 = vperm.xlu0 %244, %v45
    %v246 = vpop.permute.xlu0 %245
    %v248 = vperm.slane %v195, 6
    %v249 = vmul.f32 %v246, %v248
    %v250 = vadd.f32 %v243, %v249
    %251 = vset.pattern.permute.xlu0 7
    %252 = vperm.xlu0 %251, %v45
    %v253 = vpop.permute.xlu0 %252
    %v255 = vperm.slane %v195, 7
    %v256 = vmul.f32 %v253, %v255
    %v257 = vadd.f32 %v250, %v256
    %258 = vset.pattern.permute.xlu0 8
    %259 = vperm.xlu0 %258, %v45
    %v260 = vpop.permute.xlu0 %259
    %v262 = vperm.slane %v196, 0
    %v263 = vmul.f32 %v260, %v262
    %v264 = vadd.f32 %v257, %v263
    %265 = vst [vmem:[#allocation7] sm:$0x7] %v264
    // Predicated region
    $region18: #{tpu_custom_call.1} parent=1 // pred_check
      _
    $region19: #{tpu_custom_call.1} parent=1 // pred_check_branch
      %267 = sbr.rel (0) target = $region21
    $region20: #{tpu_custom_call.1} parent=1 // pred_region
      %269 = vsyncadd [#allocation4], 0
      %s271 = sshll.u32 [#allocation7], 4
      %s272 = int_to_ptr.vmem [resolvable:$true] %s271
      %s273 = sshll.u32 %s2, 4
      %s274 = int_to_ptr.hbm [resolvable:$true] %s273
      %276 = dma.vmem_to_hbm [thread:$0]  %s272, 64, %s274, [#allocation4]
    $region21: #{tpu_custom_call.1} parent=1 // pred_fallthru
      _
    // Predicated region
    $region22: #{tpu_custom_call.1} parent=1 // pred_check
      _
    $region23: #{tpu_custom_call.1} parent=1 // pred_check_branch
      %278 = sbr.rel (0) target = $region25
    $region24: #{tpu_custom_call.1} parent=1 // pred_region
      %280 = dma.done [#allocation4], 64
    $region25: #{tpu_custom_call.1} parent=1 // pred_fallthru
      _
    %281 = vsyncpa [#allocation3], 1
    %282 = vsyncpa [#allocation6], 1
    %283 = vsyncpa [#allocation4], 1

</llo_original>
